<compile_context>
chip_gen: v7x
topology: tpu7x:2x2x1
jax: 0.10.0
libtpu: 0.0.40
codegen_flags: <defaults>
</compile_context>

<pallas_src>
import jax
import jax.numpy as jnp
from jax.experimental import pallas as pl
from jax.experimental.pallas import tpu as pltpu

IMAGENET_MEAN = [0.485, 0.456, 0.406]
IMAGENET_STD = [0.229, 0.224, 0.225]


def _normalize_kernel(x_ref, scale_ref, bias_ref, o_ref):
    # Pure VALU hot path: fused scale/bias, no divide.  scale/bias are (tr, 1)
    # and broadcast along the 128-lane axis.
    o_ref[...] = (x_ref[...] * scale_ref[...] + bias_ref[...]).astype(o_ref.dtype)


def _round_up(x, m):
    return ((x + m - 1) // m) * m


def _tpu_vmem_bytes():
    try:
        return int(pltpu.get_tpu_info().vmem_capacity_bytes)
    except Exception:
        return None


def _choose_tiles(R, L, itemsize):
    """Generation-aware (row_tile, col_tile, vmem_limit) obeying the (8,128)/full-dim rule."""
    vmem = _tpu_vmem_bytes()
    if vmem is None:
        budget = 3 << 20          # 4x tile stays under v5e's 16 MiB scoped default
        vmem_cap = 48 << 20
        multi_tc = False
    else:
        budget = min(8 << 20, max(1 << 20, vmem // 8))
        vmem_cap = vmem * 3 // 4
        multi_tc = vmem <= (64 << 20)   # v7x: 64 MiB per-TC VMEM, 2 TCs/chip

    # Row-tile candidates: multiples of 8 (partial tail masked by Pallas), plus
    # the full dim when R is small / not a multiple of 8.
    if R <= 8:
        rows = [R]
    else:
        rows = list(range(8, _round_up(R, 8) + 1, 8))
        if R % 8 != 0:
            rows.append(R)
    rows = sorted(set(rows))

    def pick_rows(tc):
        fits = [tr for tr in rows if tr * tc * itemsize <= budget]
        if not fits:
            return None
        best = max(fits)
        if multi_tc and pl.cdiv(R, best) < 2:
            # Prefer >=2 row steps on 2-TC parts (megacore) -- but never split
            # the lane axis just to manufacture steps.
            two = [tr for tr in fits if pl.cdiv(R, tr) >= 2]
            if two:
                best = max(two)
        return best

    # Prefer full-width tiles (lane-dense, contiguous DMA, unmasked vst).
    tr = pick_rows(L)
    if tr is not None:
        tc = L
    else:
        # Even an 8-row full-width tile busts the budget: split the lane axis.
        tr = min(rows)
        lane_full = _round_up(L, 128)
        max_tc = max(128, (budget // (tr * itemsize)) // 128 * 128)
        tc = min(lane_full, max_tc)
        tc = max(tc, min(512, lane_full))   # >= 2 KiB DMA row segments

    tile_bytes = tr * tc * itemsize
    vmem_limit = max(32 << 20, int(4.5 * tile_bytes) + (2 << 20))
    vmem_limit = min(vmem_limit, vmem_cap)
    return tr, tc, vmem_limit


def imagenet_normalize(x, out_dtype=None):
    """x: (N, 3, H, W). Returns (x - IMAGENET_MEAN) / IMAGENET_STD (per channel)."""
    N, C, H, W = x.shape
    assert C == len(IMAGENET_MEAN)
    out_dtype = x.dtype if out_dtype is None else out_dtype
    R, L = N * C, H * W

    # Flatten to a lane-dense 2D slab (free reshape: contiguous row-major).
    x2 = x.reshape(R, L)

    # Host-side exact fold of the constants: (x - m)/s == x*(1/s) + (-m/s).
    scale_c = [1.0 / s for s in IMAGENET_STD]
    bias_c = [-m / s for m, s in zip(IMAGENET_MEAN, IMAGENET_STD)]
    scale = jnp.tile(jnp.asarray(scale_c, dtype=jnp.float32), N).reshape(R, 1)
    bias = jnp.tile(jnp.asarray(bias_c, dtype=jnp.float32), N).reshape(R, 1)

    tr, tc, vmem_limit = _choose_tiles(R, L, jnp.dtype(x.dtype).itemsize)
    grid = (pl.cdiv(R, tr), pl.cdiv(L, tc))

    out2 = pl.pallas_call(
        _normalize_kernel,
        out_shape=jax.ShapeDtypeStruct((R, L), out_dtype),
        grid_spec=pltpu.PrefetchScalarGridSpec(
            num_scalar_prefetch=0,
            grid=grid,
            in_specs=[
                pl.BlockSpec((tr, tc), lambda i, j: (i, j)),   # x tile
                pl.BlockSpec((tr, 1), lambda i, j: (i, 0)),    # per-row scale
                pl.BlockSpec((tr, 1), lambda i, j: (i, 0)),    # per-row bias
            ],
            out_specs=pl.BlockSpec((tr, tc), lambda i, j: (i, j)),
        ),
        compiler_params=pltpu.CompilerParams(
            dimension_semantics=("parallel", "parallel"),
            vmem_limit_bytes=vmem_limit,
        ),
        # TODO(synk): for callers that donate x, pass input_output_aliases={0: 0}
        # to reuse the input buffer (halves HBM footprint).
    )(x2, scale, bias)

    return out2.reshape(N, C, H, W)


if __name__ == "__main__":
    resol = 16
    N, C = 2, 3  # ImageNet normalization implies 3 channels
    key = jax.random.PRNGKey(0)
    x = jax.random.uniform(key, (N, C, resol, resol), dtype=jnp.float32)

    out = imagenet_normalize(x)
    out = jax.block_until_ready(out)

    # Reference: the module's (x - mean) / std with broadcast constants.
    mean = jnp.asarray(IMAGENET_MEAN, jnp.float32).reshape(1, C, 1, 1)
    std = jnp.asarray(IMAGENET_STD, jnp.float32).reshape(1, C, 1, 1)
    ref = (x - mean) / std
    assert jnp.allclose(out, ref, atol=1e-5, rtol=1e-5), float(
        jnp.max(jnp.abs(out - ref))
    )
    print("KERNEL_OK")
</pallas_src>

<mosaic_0001>
module attributes {stable_mosaic.version = 11 : i64} {
  func.func @_normalize_kernel(%arg0: i32, %arg1: i32, %arg2: memref<6x256xf32, #tpu.memory_space<vmem>>, %arg3: memref<6x1xf32, #tpu.memory_space<vmem>>, %arg4: memref<6x1xf32, #tpu.memory_space<vmem>>, %arg5: memref<6x256xf32, #tpu.memory_space<vmem>>) attributes {dimension_semantics = [#tpu.dimension_semantics<parallel>, #tpu.dimension_semantics<parallel>], iteration_bounds = array<i64: 1, 1>, scalar_prefetch = 0 : i64, scratch_operands = 0 : i64, tpu.core_type = #tpu.core_type<tc>, window_params = [{transform_indices = @transform_0, window_bounds = array<i64: 6, 256>}, {transform_indices = @transform_1, window_bounds = array<i64: 6, 1>}, {transform_indices = @transform_2, window_bounds = array<i64: 6, 1>}, {transform_indices = @transform_3, window_bounds = array<i64: 6, 256>}]} {
    %c0 = arith.constant 0 : index
    %c0_0 = arith.constant 0 : index
    %0 = vector.load %arg2[%c0, %c0_0] : memref<6x256xf32, #tpu.memory_space<vmem>>, vector<6x256xf32>
    %c0_1 = arith.constant 0 : index
    %c0_2 = arith.constant 0 : index
    %1 = vector.load %arg3[%c0_1, %c0_2] : memref<6x1xf32, #tpu.memory_space<vmem>>, vector<6x1xf32>
    %2 = vector.broadcast %1 : vector<6x1xf32> to vector<6x256xf32>
    %3 = arith.mulf %0, %2 : vector<6x256xf32>
    %c0_3 = arith.constant 0 : index
    %c0_4 = arith.constant 0 : index
    %4 = vector.load %arg4[%c0_3, %c0_4] : memref<6x1xf32, #tpu.memory_space<vmem>>, vector<6x1xf32>
    %5 = vector.broadcast %4 : vector<6x1xf32> to vector<6x256xf32>
    %6 = arith.addf %3, %5 : vector<6x256xf32>
    %c0_5 = arith.constant 0 : index
    %c0_6 = arith.constant 0 : index
    %7 = vector.load %arg5[%c0_5, %c0_6] : memref<6x256xf32, #tpu.memory_space<vmem>>, vector<6x256xf32>
    tpu.vector_store %arg5[%c0_5, %c0_6], %6 {strides = array<i32>} : memref<6x256xf32, #tpu.memory_space<vmem>>, vector<6x256xf32>,
    return
  }
  func.func @transform_0(%arg0: i32, %arg1: i32) -> (i32, i32) {
    %c0_i32 = arith.constant 0 : i32
    return %arg0, %arg1 : i32, i32
  }
  func.func @transform_1(%arg0: i32, %arg1: i32) -> (i32, i32) {
    %c0_i32 = arith.constant 0 : i32
    %c0_i32_0 = arith.constant 0 : i32
    return %arg0, %c0_i32 : i32, i32
  }
  func.func @transform_2(%arg0: i32, %arg1: i32) -> (i32, i32) {
    %c0_i32 = arith.constant 0 : i32
    %c0_i32_0 = arith.constant 0 : i32
    return %arg0, %c0_i32 : i32, i32
  }
  func.func @transform_3(%arg0: i32, %arg1: i32) -> (i32, i32) {
    %c0_i32 = arith.constant 0 : i32
    return %arg0, %arg1 : i32, i32
  }
}

</mosaic_0001>

<llo_original>
// kernel: tpu_custom_call.1
$region0: #{tpu_custom_call.1}
  #allocation0 [shape = 'u32[]', space=smem, size = 0x4, offset = 0x4, fixed_abs, tag = 'smem constant byte address 0x4 - core index']
  #allocation1 [shape = 'u32[144,128]{1,0:T(1,128)}', space=vmem, size = 0x12000, scoped, tag = 'internal scratch']
  %s0 = inlined_call_operand.vmem [shape: f32[6,256], index: 0, kind: input, shape index: {}]
  %s1 = inlined_call_operand.vmem [shape: f32[6,1], index: 1, kind: input, shape index: {}]
  %s2 = inlined_call_operand.vmem [shape: f32[6,1], index: 2, kind: input, shape index: {}]
  %s3 = inlined_call_operand.hbm [shape: f32[6,256], index: 3, kind: output, shape index: {}]
  %s4 = sld [smem:[#allocation0]]
  $region22: #{tpu_custom_call.1} parent=0
    _
  %s6 = ssub.s32 1, %s4
  %s7 = scalar_select 0, %s6, %s4
  $region1: #{tpu_custom_call.1} parent=0
    #allocation2 [shape = 'u8[8192]{0}', space=vmem, size = 0x2000, scoped, tag = 'output window, operand 0, single buffered']
    #allocation3 [shape = 's32[1]{0}', space=sflag, size = 0x4, scoped, tag = 'scoped memory for tpu_custom_call.1']
    %8 = vsyncpa [#allocation3], 0
    // Predicated region
    $region2: #{tpu_custom_call.1} parent=1 // pred_check
      _
    $region3: #{tpu_custom_call.1} parent=1 // pred_check_branch
      %10 = sbr.rel (0) target = $region5
    $region4: #{tpu_custom_call.1} parent=1 // pred_region
      _
    $region5: #{tpu_custom_call.1} parent=1 // pred_fallthru
      _
    // Predicated region
    $region6: #{tpu_custom_call.1} parent=1 // pred_check
      _
    $region7: #{tpu_custom_call.1} parent=1 // pred_check_branch
      %12 = sbr.rel (0) target = $region9
    $region8: #{tpu_custom_call.1} parent=1 // pred_region
      _
    $region9: #{tpu_custom_call.1} parent=1 // pred_fallthru
      _
    // Predicated region
    $region10: #{tpu_custom_call.1} parent=1 // pred_check
      _
    $region11: #{tpu_custom_call.1} parent=1 // pred_check_branch
      %14 = sbr.rel (0) target = $region13
    $region12: #{tpu_custom_call.1} parent=1 // pred_region
      _
    $region13: #{tpu_custom_call.1} parent=1 // pred_fallthru
      _
    %v15 = vld [vmem:[%s0] sm:$0x3f]
    %v16 = vld [vmem:[%s0 + $0x8] sm:$0x3f]
    %v17 = vld [vmem:[%s1] sm:$0x3f]
    %19 = vset.pattern.permute.xlu0 0
    %20 = vperm.xlu0 %19, %v17
    %v21 = vpop.permute.xlu0 %20
    %v23 = vmul.f32 %v15, %v21
    %v24 = vmul.f32 %v16, %v21
    %v25 = vld [vmem:[%s2] sm:$0x3f]
    %27 = vset.pattern.permute.xlu0 0
    %28 = vperm.xlu0 %27, %v25
    %v29 = vpop.permute.xlu0 %28
    %v31 = vadd.f32 %v23, %v29
    %v32 = vadd.f32 %v24, %v29
    %33 = vst [vmem:[#allocation2] sm:$0x3f] %v31
    %34 = vst [vmem:[#allocation2 + $0x8] sm:$0x3f] %v32
    // Predicated region
    $region14: #{tpu_custom_call.1} parent=1 // pred_check
      _
    $region15: #{tpu_custom_call.1} parent=1 // pred_check_branch
      %36 = sbr.rel (0) target = $region17
    $region16: #{tpu_custom_call.1} parent=1 // pred_region
      %s38 = ssub.s32 256, 256
      %39 = vsyncadd [#allocation3], %s38
      %s41 = sshll.u32 [#allocation2], 4
      %s42 = int_to_ptr.vmem [resolvable:$true] %s41
      %44 = dma.vmem_to_hbm [thread:$0]  %s42, 256, %s3, [#allocation3]
    $region17: #{tpu_custom_call.1} parent=1 // pred_fallthru
      _
    // Predicated region
    $region18: #{tpu_custom_call.1} parent=1 // pred_check
      _
    $region19: #{tpu_custom_call.1} parent=1 // pred_check_branch
      %46 = sbr.rel (0) target = $region21
    $region20: #{tpu_custom_call.1} parent=1 // pred_region
      %47 = dma.done [#allocation3], 256
    $region21: #{tpu_custom_call.1} parent=1 // pred_fallthru
      _
    %48 = vsyncpa [#allocation3], 1

</llo_original>
